<compile_context>
chip_gen: v6e
topology: v6e:2x2x1
jax: 0.10.0
libtpu: 0.0.40
codegen_flags: <defaults>
</compile_context>

<pallas_src>
import jax
import jax.numpy as jnp
from jax import lax
from jax.experimental import pallas as pl
from jax.experimental.pallas import tpu as pltpu


# ---------------------------------------------------------------------------
# One-time parameter preparation (hoisted out of the per-step path).
# ---------------------------------------------------------------------------
def prepare_lstm_params(weight_ih, weight_hh, bias_ih, bias_hh,
                        compute_dtype=jnp.bfloat16):
    """Pre-transpose torch-layout LSTM params once for the Pallas kernels.

    weight_ih: (4H, In), weight_hh: (4H, H), biases: (1, 4H).
    Returns (wx (In, 4H), wh (H, 4H)) in `compute_dtype` and the pre-summed
    bias (1, 4H) in f32.
    """
    four_h = weight_ih.shape[0]
    assert weight_hh.shape[0] == four_h
    wx = weight_ih.T.astype(compute_dtype)                  # (In, 4H)
    wh = weight_hh.T.astype(compute_dtype)                  # (H, 4H)
    b = (bias_ih + bias_hh).reshape(1, four_h).astype(jnp.float32)
    return wx, wh, b


def _vmem_limit_bytes():
    """Generation-aware scoped-VMEM limit (~75% of physical, >= 32 MiB)."""
    default = 32 * 1024 * 1024
    try:
        info = pltpu.get_tpu_info()
    except Exception:
        return default
    cap = None
    for name in ("vmem_capacity_bytes", "vmem_size_bytes", "vmem_bytes"):
        cap = getattr(info, name, None)
        if cap:
            break
    if not cap:
        return default
    return max(default, int(cap) * 3 // 4)


def _lstm_gates(gates, c_prev, hidden):
    """torch .chunk(4, 1) order: [ingate | forgetgate | cellgate | outgate]."""
    i = jax.nn.sigmoid(gates[:, 0 * hidden:1 * hidden])
    f = jax.nn.sigmoid(gates[:, 1 * hidden:2 * hidden])
    g = jnp.tanh(gates[:, 2 * hidden:3 * hidden])
    o = jax.nn.sigmoid(gates[:, 3 * hidden:4 * hidden])
    c_new = f * c_prev + i * g
    h_new = o * jnp.tanh(c_new)
    return h_new, c_new


# ---------------------------------------------------------------------------
# Single-step kernel (matches LSTMCell.forward exactly).
# ---------------------------------------------------------------------------
def _lstm_cell_kernel(x_ref, hx_ref, cx_ref, wx_ref, wh_ref, b_ref,
                      hy_ref, cy_ref):
    cd = wx_ref.dtype
    hidden = hy_ref.shape[1]
    gates = jnp.dot(x_ref[...].astype(cd), wx_ref[...],
                    preferred_element_type=jnp.float32)
    gates = gates + jnp.dot(hx_ref[...].astype(cd), wh_ref[...],
                            preferred_element_type=jnp.float32)
    gates = gates + b_ref[...]
    hy, cy = _lstm_gates(gates, cx_ref[...].astype(jnp.float32), hidden)
    hy_ref[...] = hy.astype(hy_ref.dtype)
    cy_ref[...] = cy.astype(cy_ref.dtype)


def lstm_cell_forward(x, state, wx, wh, b):
    """Pallas equivalent of LSTMCell.forward (single step).

    Returns (hy, (hy, cy)) exactly like the torch module.  Prefer
    lstm_sequence_forward for whole sequences: a per-step pallas_call pays
    dispatch and HBM round trips every timestep.
    """
    hx, cx = state
    B, input_size = x.shape
    hidden = hx.shape[1]
    four_h = 4 * hidden
    assert wx.shape == (input_size, four_h)
    assert wh.shape == (hidden, four_h)
    assert b.shape == (1, four_h)

    full = lambda shape: pl.BlockSpec(shape, lambda: (0,) * len(shape))

    hy, cy = pl.pallas_call(
        _lstm_cell_kernel,
        out_shape=(
            jax.ShapeDtypeStruct((B, hidden), x.dtype),
            jax.ShapeDtypeStruct((B, hidden), x.dtype),
        ),
        in_specs=[
            full((B, input_size)),      # x (cast in-kernel)
            full((B, hidden)),          # hx
            full((B, hidden)),          # cx
            full((input_size, four_h)),  # W_ih^T
            full((hidden, four_h)),      # W_hh^T
            full((1, four_h)),           # pre-summed bias
        ],
        out_specs=(full((B, hidden)), full((B, hidden))),
        compiler_params=pltpu.CompilerParams(
            vmem_limit_bytes=_vmem_limit_bytes()),
    )(x, hx, cx, wx, wh, b)

    return hy, (hy, cy)


# ---------------------------------------------------------------------------
# Full-sequence kernel: whole time loop inside ONE pallas_call.
# grid = (batch_tiles, time_chunks); weights resident in VMEM; h/c carried as
# f32 VMEM scratch; TC timesteps per grid iteration (unrolled fori_loop).
# ---------------------------------------------------------------------------
def _lstm_seq_kernel(x_ref, hx0_ref, cx0_ref, wx_ref, wh_ref, b_ref,
                     hy_ref, cy_ref, h_sc, c_sc):
    ti = pl.program_id(1)

    @pl.when(ti == 0)
    def _init():
        h_sc[...] = hx0_ref[...].astype(jnp.float32)
        c_sc[...] = cx0_ref[...].astype(jnp.float32)

    tb, hidden = h_sc.shape
    tc = x_ref.shape[0]
    cd = wx_ref.dtype
    wx = wx_ref[...]
    wh = wh_ref[...]
    # Hoist the bias broadcast out of the unrolled time loop.
    bias = jnp.broadcast_to(b_ref[...], (tb, b_ref.shape[1]))

    def step(t, carry):
        h, c = carry
        gates = jnp.dot(x_ref[t].astype(cd), wx,
                        preferred_element_type=jnp.float32)
        gates = gates + jnp.dot(h.astype(cd), wh,
                                preferred_element_type=jnp.float32)
        gates = gates + bias
        h_new, c_new = _lstm_gates(gates, c, hidden)
        hy_ref[t] = h_new.astype(hy_ref.dtype)
        return h_new, c_new

    h, c = lax.fori_loop(0, tc, step, (h_sc[...], c_sc[...]), unroll=True)
    h_sc[...] = h
    c_sc[...] = c

    # Resident (constant-index-map) cy block only needs its last value.
    @pl.when(ti == pl.num_programs(1) - 1)
    def _final():
        cy_ref[...] = c.astype(cy_ref.dtype)


def _largest_divisor_leq(n, upper):
    for d in range(min(n, upper), 0, -1):
        if n % d == 0:
            return d
    return 1


def lstm_sequence_forward(xs, state, wx, wh, b, *,
                          time_chunk=8, batch_tile=None):
    """Runs the LSTM cell over xs: (T, B, In) in a single pallas_call.

    Returns (hy_all (T, B, H), (h_T, c_T)).
    """
    hx, cx = state
    T, B, input_size = xs.shape
    hidden = hx.shape[1]
    four_h = 4 * hidden
    assert wx.shape == (input_size, four_h)
    assert wh.shape == (hidden, four_h)
    assert b.shape == (1, four_h)

    tc = _largest_divisor_leq(T, time_chunk)        # timesteps per grid step
    tb = B if batch_tile is None else batch_tile    # batch rows per core/tile
    assert B % tb == 0, "batch_tile must divide the batch"
    if tb != B:
        assert tb % 8 == 0, "batch_tile must be a multiple of 8 (sublane)"
    n_b, n_t = B // tb, T // tc

    def build(single_buffer_resident):
        resident_kwargs = (
            dict(pipeline_mode=pl.Buffered(1)) if single_buffer_resident else {})

        def resident(shape, index_map):
            # Constant / per-batch-tile inputs: no benefit from double-buffering.
            return pl.BlockSpec(shape, index_map, **resident_kwargs)

        grid_spec = pltpu.PrefetchScalarGridSpec(
            num_scalar_prefetch=0,
            grid=(n_b, n_t),
            in_specs=[
                # x: TC timesteps per grid step, lane-dense chunked DMA.
                pl.BlockSpec((tc, tb, input_size), lambda bi, ti: (ti, bi, 0)),
                resident((tb, hidden), lambda bi, ti: (bi, 0)),          # hx0
                resident((tb, hidden), lambda bi, ti: (bi, 0)),          # cx0
                resident((input_size, four_h), lambda bi, ti: (0, 0)),   # W_ih^T
                resident((hidden, four_h), lambda bi, ti: (0, 0)),       # W_hh^T
                resident((1, four_h), lambda bi, ti: (0, 0)),            # bias
            ],
            out_specs=(
                pl.BlockSpec((tc, tb, hidden), lambda bi, ti: (ti, bi, 0)),  # hy
                pl.BlockSpec((tb, hidden), lambda bi, ti: (bi, 0)),          # final cy
            ),
            scratch_shapes=[
                pltpu.VMEM((tb, hidden), jnp.float32),   # carried h (f32)
                pltpu.VMEM((tb, hidden), jnp.float32),   # carried c (f32)
            ],
        )
        return pl.pallas_call(
            _lstm_seq_kernel,
            out_shape=(
                jax.ShapeDtypeStruct((T, B, hidden), xs.dtype),
                jax.ShapeDtypeStruct((B, hidden), xs.dtype),
            ),
            grid_spec=grid_spec,
            compiler_params=pltpu.CompilerParams(
                dimension_semantics=("parallel", "arbitrary"),
                vmem_limit_bytes=_vmem_limit_bytes()),
        )

    try:
        hy_all, cy = build(True)(xs, hx, cx, wx, wh, b)
    except Exception:
        # Fallback if this Pallas build rejects pipeline_mode=pl.Buffered(1).
        hy_all, cy = build(False)(xs, hx, cx, wx, wh, b)

    return hy_all, (hy_all[-1], cy)


# ---------------------------------------------------------------------------
# Pure-JAX reference (mirrors the torch forward).
# ---------------------------------------------------------------------------
def _reference_step(x, state, weight_ih, weight_hh, bias_ih, bias_hh):
    hx, cx = state
    gates = x @ weight_ih.T + bias_ih + hx @ weight_hh.T + bias_hh
    H = hx.shape[1]
    i = jax.nn.sigmoid(gates[:, 0 * H:1 * H])
    f = jax.nn.sigmoid(gates[:, 1 * H:2 * H])
    g = jnp.tanh(gates[:, 2 * H:3 * H])
    o = jax.nn.sigmoid(gates[:, 3 * H:4 * H])
    cy = f * cx + i * g
    hy = o * jnp.tanh(cy)
    return hy, (hy, cy)


if __name__ == "__main__":
    B, INPUT_SIZE, HIDDEN, T = 8, 32, 32, 8
    FOUR_H = 4 * HIDDEN

    key = jax.random.PRNGKey(0)
    kx, ks, kh, kc, kwi, kwh, kbi, kbh = jax.random.split(key, 8)

    # Deterministic synthetic parameters (checkpoint shapes, uniform init).
    bound = 1.0 / jnp.sqrt(HIDDEN)
    weight_ih = jax.random.uniform(kwi, (FOUR_H, INPUT_SIZE), jnp.float32, -bound, bound)
    weight_hh = jax.random.uniform(kwh, (FOUR_H, HIDDEN), jnp.float32, -bound, bound)
    bias_ih = jax.random.uniform(kbi, (1, FOUR_H), jnp.float32, -bound, bound)
    bias_hh = jax.random.uniform(kbh, (1, FOUR_H), jnp.float32, -bound, bound)

    x = jax.random.normal(kx, (B, INPUT_SIZE), jnp.float32)
    xs = jax.random.normal(ks, (T, B, INPUT_SIZE), jnp.float32)
    hx = jax.random.normal(kh, (B, HIDDEN), jnp.float32)
    cx = jax.random.normal(kc, (B, HIDDEN), jnp.float32)

    # Params prepared ONCE (f32 for exact checks, bf16 = production default).
    wx_f32, wh_f32, b_fused = prepare_lstm_params(
        weight_ih, weight_hh, bias_ih, bias_hh, compute_dtype=jnp.float32)
    wx_bf16, wh_bf16, _ = prepare_lstm_params(
        weight_ih, weight_hh, bias_ih, bias_hh, compute_dtype=jnp.bfloat16)

    hy_ref, (_, cy_ref) = _reference_step(x, (hx, cx), weight_ih, weight_hh,
                                          bias_ih, bias_hh)

    # --- single step, f32 matmul: exact ---
    hy, (hy2, cy) = lstm_cell_forward(x, (hx, cx), wx_f32, wh_f32, b_fused)
    jax.block_until_ready((hy, hy2, cy))
    assert jnp.allclose(hy, hy_ref, atol=1e-5, rtol=1e-5)
    assert jnp.allclose(cy, cy_ref, atol=1e-5, rtol=1e-5)

    # --- single step, bf16 matmul (fast path): loose ---
    hy_b, (_, cy_b) = lstm_cell_forward(x, (hx, cx), wx_bf16, wh_bf16, b_fused)
    jax.block_until_ready((hy_b, cy_b))
    assert jnp.allclose(hy_b, hy_ref, atol=3e-2, rtol=3e-2)
    assert jnp.allclose(cy_b, cy_ref, atol=3e-2, rtol=3e-2)

    # --- reference sequence ---
    h_r, c_r = hx, cx
    hy_ref_steps = []
    for t in range(T):
        h_r, (_, c_r) = _reference_step(xs[t], (h_r, c_r), weight_ih, weight_hh,
                                        bias_ih, bias_hh)
        hy_ref_steps.append(h_r)
    hy_ref_seq = jnp.stack(hy_ref_steps)

    # --- full sequence inside ONE pallas_call (2 time chunks), f32: exact ---
    hy_seq, (h_last, c_last) = lstm_sequence_forward(
        xs, (hx, cx), wx_f32, wh_f32, b_fused, time_chunk=4)
    jax.block_until_ready((hy_seq, h_last, c_last))
    assert jnp.allclose(hy_seq, hy_ref_seq, atol=1e-5, rtol=1e-5)
    assert jnp.allclose(h_last, hy_ref_seq[-1], atol=1e-5, rtol=1e-5)
    assert jnp.allclose(c_last, c_r, atol=1e-5, rtol=1e-5)

    # --- full sequence, bf16 matmul (fast path): loose ---
    hy_seq_b, (_, c_last_b) = lstm_sequence_forward(
        xs, (hx, cx), wx_bf16, wh_bf16, b_fused, time_chunk=4)
    jax.block_until_ready((hy_seq_b, c_last_b))
    assert jnp.allclose(hy_seq_b, hy_ref_seq, atol=5e-2, rtol=5e-2)
    assert jnp.allclose(c_last_b, c_r, atol=5e-2, rtol=5e-2)

    print("KERNEL_OK")
</pallas_src>

<mosaic_0001>
module attributes {stable_mosaic.version = 11 : i64} {
  func.func @_lstm_cell_kernel(%arg0: memref<8x32xf32, #tpu.memory_space<vmem>>, %arg1: memref<8x32xf32, #tpu.memory_space<vmem>>, %arg2: memref<8x32xf32, #tpu.memory_space<vmem>>, %arg3: memref<32x128xf32, #tpu.memory_space<vmem>>, %arg4: memref<32x128xf32, #tpu.memory_space<vmem>>, %arg5: memref<1x128xf32, #tpu.memory_space<vmem>>, %arg6: memref<8x32xf32, #tpu.memory_space<vmem>>, %arg7: memref<8x32xf32, #tpu.memory_space<vmem>>) attributes {dimension_semantics = [], scalar_prefetch = 0 : i64, scratch_operands = 0 : i64, tpu.core_type = #tpu.core_type<tc>} {
    %c0 = arith.constant 0 : index
    %c0_0 = arith.constant 0 : index
    %0 = vector.load %arg0[%c0, %c0_0] : memref<8x32xf32, #tpu.memory_space<vmem>>, vector<8x32xf32>
    %c0_1 = arith.constant 0 : index
    %c0_2 = arith.constant 0 : index
    %1 = vector.load %arg3[%c0_1, %c0_2] : memref<32x128xf32, #tpu.memory_space<vmem>>, vector<32x128xf32>
    %cst = arith.constant dense<0.000000e+00> : vector<8x128xf32>
    %2 = tpu.matmul %0, %1, %cst {dimension_numbers = #tpu.dot_dimension_numbers<[1], [0], [0], [1], [0, 0, 1, 1], [], []>} : vector<8x32xf32>, vector<32x128xf32>, vector<8x128xf32> -> vector<8x128xf32>
    %c0_3 = arith.constant 0 : index
    %c0_4 = arith.constant 0 : index
    %3 = vector.load %arg1[%c0_3, %c0_4] : memref<8x32xf32, #tpu.memory_space<vmem>>, vector<8x32xf32>
    %c0_5 = arith.constant 0 : index
    %c0_6 = arith.constant 0 : index
    %4 = vector.load %arg4[%c0_5, %c0_6] : memref<32x128xf32, #tpu.memory_space<vmem>>, vector<32x128xf32>
    %cst_7 = arith.constant dense<0.000000e+00> : vector<8x128xf32>
    %5 = tpu.matmul %3, %4, %cst_7 {dimension_numbers = #tpu.dot_dimension_numbers<[1], [0], [0], [1], [0, 0, 1, 1], [], []>} : vector<8x32xf32>, vector<32x128xf32>, vector<8x128xf32> -> vector<8x128xf32>
    %6 = arith.addf %2, %5 : vector<8x128xf32>
    %c0_8 = arith.constant 0 : index
    %c0_9 = arith.constant 0 : index
    %7 = vector.load %arg5[%c0_8, %c0_9] : memref<1x128xf32, #tpu.memory_space<vmem>>, vector<1x128xf32>
    %8 = vector.broadcast %7 : vector<1x128xf32> to vector<8x128xf32>
    %9 = arith.addf %6, %8 : vector<8x128xf32>
    %c0_10 = arith.constant 0 : index
    %c0_11 = arith.constant 0 : index
    %10 = vector.load %arg2[%c0_10, %c0_11] : memref<8x32xf32, #tpu.memory_space<vmem>>, vector<8x32xf32>
    %11 = vector.extract_strided_slice %9 {offsets = [0, 0], sizes = [8, 32], strides = [1, 1]} : vector<8x128xf32> to vector<8x32xf32>
    %12 = arith.negf %11 : vector<8x32xf32>
    %13 = math.exp %12 : vector<8x32xf32>
    %cst_12 = arith.constant 1.000000e+00 : f32
    %14 = vector.broadcast %cst_12 : f32 to vector<8x32xf32>
    %15 = arith.addf %14, %13 : vector<8x32xf32>
    %16 = arith.divf %14, %15 : vector<8x32xf32>
    %17 = vector.extract_strided_slice %9 {offsets = [0, 32], sizes = [8, 32], strides = [1, 1]} : vector<8x128xf32> to vector<8x32xf32>
    %18 = arith.negf %17 : vector<8x32xf32>
    %19 = math.exp %18 : vector<8x32xf32>
    %cst_13 = arith.constant 1.000000e+00 : f32
    %20 = vector.broadcast %cst_13 : f32 to vector<8x32xf32>
    %21 = arith.addf %20, %19 : vector<8x32xf32>
    %22 = arith.divf %20, %21 : vector<8x32xf32>
    %23 = vector.extract_strided_slice %9 {offsets = [0, 64], sizes = [8, 32], strides = [1, 1]} : vector<8x128xf32> to vector<8x32xf32>
    %24 = math.tanh %23 : vector<8x32xf32>
    %25 = vector.extract_strided_slice %9 {offsets = [0, 96], sizes = [8, 32], strides = [1, 1]} : vector<8x128xf32> to vector<8x32xf32>
    %26 = arith.negf %25 : vector<8x32xf32>
    %27 = math.exp %26 : vector<8x32xf32>
    %cst_14 = arith.constant 1.000000e+00 : f32
    %28 = vector.broadcast %cst_14 : f32 to vector<8x32xf32>
    %29 = arith.addf %28, %27 : vector<8x32xf32>
    %30 = arith.divf %28, %29 : vector<8x32xf32>
    %31 = arith.mulf %22, %10 : vector<8x32xf32>
    %32 = arith.mulf %16, %24 : vector<8x32xf32>
    %33 = arith.addf %31, %32 : vector<8x32xf32>
    %34 = math.tanh %33 : vector<8x32xf32>
    %35 = arith.mulf %30, %34 : vector<8x32xf32>
    %c0_15 = arith.constant 0 : index
    %c0_16 = arith.constant 0 : index
    %36 = vector.load %arg6[%c0_15, %c0_16] : memref<8x32xf32, #tpu.memory_space<vmem>>, vector<8x32xf32>
    tpu.vector_store %arg6[%c0_15, %c0_16], %35 {strides = array<i32>} : memref<8x32xf32, #tpu.memory_space<vmem>>, vector<8x32xf32>,
    %c0_17 = arith.constant 0 : index
    %c0_18 = arith.constant 0 : index
    %37 = vector.load %arg7[%c0_17, %c0_18] : memref<8x32xf32, #tpu.memory_space<vmem>>, vector<8x32xf32>
    tpu.vector_store %arg7[%c0_17, %c0_18], %33 {strides = array<i32>} : memref<8x32xf32, #tpu.memory_space<vmem>>, vector<8x32xf32>,
    return
  }
}

</mosaic_0001>

<llo_original>
// kernel: tpu_custom_call.1
$region0: #{tpu_custom_call.1}
  #allocation0 [shape = 'u32[]', space=smem, size = 0x4, offset = 0x4, fixed_abs, tag = 'smem constant byte address 0x4 - core index']
  #allocation1 [shape = 'u32[144,128]{1,0:T(1,128)}', space=vmem, size = 0x12000, scoped, tag = 'internal scratch']
  %s0 = inlined_call_operand.hbm [shape: f32[8,32], index: 0, kind: input, shape index: {}]
  %s1 = inlined_call_operand.hbm [shape: f32[8,32], index: 1, kind: input, shape index: {}]
  %s2 = inlined_call_operand.hbm [shape: f32[8,32], index: 2, kind: input, shape index: {}]
  %s3 = inlined_call_operand.hbm [shape: f32[32,128], index: 3, kind: input, shape index: {}]
  %s4 = inlined_call_operand.hbm [shape: f32[32,128], index: 4, kind: input, shape index: {}]
  %s5 = inlined_call_operand.vmem [shape: f32[1,128], index: 5, kind: input, shape index: {}]
  %s6 = inlined_call_operand.hbm [shape: f32[8,32], index: 6, kind: output, shape index: {0}]
  %s7 = inlined_call_operand.hbm [shape: f32[8,32], index: 7, kind: output, shape index: {1}]
  %8 = xla_tuple %s6, %s7
  %s9 = sld [smem:[#allocation0]]
  $region62: #{tpu_custom_call.1} parent=0
    _
  %s11 = ssub.s32 1, %s9
  %s12 = scalar_select 0, %s11, %s9
  $region1: #{tpu_custom_call.1} parent=0
    #allocation2 [shape = 'u8[4096]{0}', space=vmem, size = 0x1000, scoped, tag = 'input window, operand 0, single buffered']
    #allocation3 [shape = 's32[1]{0}', space=sflag, size = 0x4, scoped, tag = 'scoped memory for tpu_custom_call.1']
    #allocation4 [shape = 's32[1]{0}', space=sflag, size = 0x4, scoped, tag = 'scoped memory for tpu_custom_call.1']
    #allocation5 [shape = 'u8[4096]{0}', space=vmem, size = 0x1000, scoped, tag = 'input window, operand 1, single buffered']
    #allocation6 [shape = 's32[1]{0}', space=sflag, size = 0x4, scoped, tag = 'scoped memory for tpu_custom_call.1']
    #allocation7 [shape = 'u8[4096]{0}', space=vmem, size = 0x1000, scoped, tag = 'input window, operand 2, single buffered']
    #allocation8 [shape = 'u8[16384]{0}', space=vmem, size = 0x4000, scoped, tag = 'input window, operand 3, single buffered']
    #allocation9 [shape = 's32[1]{0}', space=sflag, size = 0x4, scoped, tag = 'scoped memory for tpu_custom_call.1']
    #allocation10 [shape = 'u8[16384]{0}', space=vmem, size = 0x4000, scoped, tag = 'input window, operand 4, single buffered']
    #allocation11 [shape = 'u8[4096]{0}', space=vmem, size = 0x1000, scoped, tag = 'output window, operand 0, single buffered']
    #allocation12 [shape = 'u8[4096]{0}', space=vmem, size = 0x1000, scoped, tag = 'output window, operand 1, single buffered']
    #allocation13 [shape = 's32[1]{0}', space=sflag, size = 0x4, scoped, tag = 'scoped memory for tpu_custom_call.1']
    %13 = vsyncpa [#allocation3], 0
    %14 = vsyncpa [#allocation6], 0
    %15 = vsyncpa [#allocation9], 0
    %16 = vsyncpa [#allocation4], 0
    %17 = vsyncpa [#allocation13], 0
    // Predicated region
    $region2: #{tpu_custom_call.1} parent=1 // pred_check
      _
    $region3: #{tpu_custom_call.1} parent=1 // pred_check_branch
      %19 = sbr.rel (0) target = $region5
    $region4: #{tpu_custom_call.1} parent=1 // pred_region
      %s21 = ssub.s32 128, 128
      %22 = vsyncadd [#allocation3], %s21
      %s24 = sshll.u32 [#allocation2], 4
      %s25 = int_to_ptr.vmem [resolvable:$true] %s24
      %27 = dma.hbm_to_vmem [thread:$0]  %s0, 128, %s25, [#allocation3]
    $region5: #{tpu_custom_call.1} parent=1 // pred_fallthru
      _
    // Predicated region
    $region6: #{tpu_custom_call.1} parent=1 // pred_check
      _
    $region7: #{tpu_custom_call.1} parent=1 // pred_check_branch
      %29 = sbr.rel (0) target = $region9
    $region8: #{tpu_custom_call.1} parent=1 // pred_region
      %s31 = ssub.s32 128, 128
      %32 = vsyncadd [#allocation6], %s31
      %s34 = sshll.u32 [#allocation5], 4
      %s35 = int_to_ptr.vmem [resolvable:$true] %s34
      %37 = dma.hbm_to_vmem [thread:$0]  %s1, 128, %s35, [#allocation6]
    $region9: #{tpu_custom_call.1} parent=1 // pred_fallthru
      _
    // Predicated region
    $region10: #{tpu_custom_call.1} parent=1 // pred_check
      _
    $region11: #{tpu_custom_call.1} parent=1 // pred_check_branch
      %39 = sbr.rel (0) target = $region13
    $region12: #{tpu_custom_call.1} parent=1 // pred_region
      %s41 = ssub.s32 128, 128
      %42 = vsyncadd [#allocation6], %s41
      %s44 = sshll.u32 [#allocation7], 4
      %s45 = int_to_ptr.vmem [resolvable:$true] %s44
      %47 = dma.hbm_to_vmem [thread:$0]  %s2, 128, %s45, [#allocation6]
    $region13: #{tpu_custom_call.1} parent=1 // pred_fallthru
      _
    // Predicated region
    $region14: #{tpu_custom_call.1} parent=1 // pred_check
      _
    $region15: #{tpu_custom_call.1} parent=1 // pred_check_branch
      %49 = sbr.rel (0) target = $region17
    $region16: #{tpu_custom_call.1} parent=1 // pred_region
      %s51 = ssub.s32 512, 512
      %52 = vsyncadd [#allocation9], %s51
      %s53 = sshll.u32 [#allocation8], 4
      %s54 = int_to_ptr.vmem [resolvable:$true] %s53
      %59 = dma.hbm_to_vmem [thread:$0]  %s3, 512, %s54, [#allocation9], 128, 128, 8
    $region17: #{tpu_custom_call.1} parent=1 // pred_fallthru
      _
    // Predicated region
    $region18: #{tpu_custom_call.1} parent=1 // pred_check
      _
    $region19: #{tpu_custom_call.1} parent=1 // pred_check_branch
      %61 = sbr.rel (0) target = $region21
    $region20: #{tpu_custom_call.1} parent=1 // pred_region
      %s63 = ssub.s32 512, 512
      %64 = vsyncadd [#allocation9], %s63
      %s65 = sshll.u32 [#allocation10], 4
      %s66 = int_to_ptr.vmem [resolvable:$true] %s65
      %71 = dma.hbm_to_vmem [thread:$0]  %s4, 512, %s66, [#allocation9], 128, 128, 8
    $region21: #{tpu_custom_call.1} parent=1 // pred_fallthru
      _
    // Predicated region
    $region22: #{tpu_custom_call.1} parent=1 // pred_check
      _
    $region23: #{tpu_custom_call.1} parent=1 // pred_check_branch
      %73 = sbr.rel (0) target = $region25
    $region24: #{tpu_custom_call.1} parent=1 // pred_region
      _
    $region25: #{tpu_custom_call.1} parent=1 // pred_fallthru
      _
    // Predicated region
    $region26: #{tpu_custom_call.1} parent=1 // pred_check
      _
    $region27: #{tpu_custom_call.1} parent=1 // pred_check_branch
      %75 = sbr.rel (0) target = $region29
    $region28: #{tpu_custom_call.1} parent=1 // pred_region
      %76 = dma.done [#allocation3], 128
    $region29: #{tpu_custom_call.1} parent=1 // pred_fallthru
      _
    // Predicated region
    $region30: #{tpu_custom_call.1} parent=1 // pred_check
      _
    $region31: #{tpu_custom_call.1} parent=1 // pred_check_branch
      %78 = sbr.rel (0) target = $region33
    $region32: #{tpu_custom_call.1} parent=1 // pred_region
      %79 = dma.done [#allocation6], 128
    $region33: #{tpu_custom_call.1} parent=1 // pred_fallthru
      _
    // Predicated region
    $region34: #{tpu_custom_call.1} parent=1 // pred_check
      _
    $region35: #{tpu_custom_call.1} parent=1 // pred_check_branch
      %81 = sbr.rel (0) target = $region37
    $region36: #{tpu_custom_call.1} parent=1 // pred_region
      %82 = dma.done [#allocation6], 128
    $region37: #{tpu_custom_call.1} parent=1 // pred_fallthru
      _
    // Predicated region
    $region38: #{tpu_custom_call.1} parent=1 // pred_check
      _
    $region39: #{tpu_custom_call.1} parent=1 // pred_check_branch
      %84 = sbr.rel (0) target = $region41
    $region40: #{tpu_custom_call.1} parent=1 // pred_region
      %85 = dma.done [#allocation9], 512
    $region41: #{tpu_custom_call.1} parent=1 // pred_fallthru
      _
    // Predicated region
    $region42: #{tpu_custom_call.1} parent=1 // pred_check
      _
    $region43: #{tpu_custom_call.1} parent=1 // pred_check_branch
      %87 = sbr.rel (0) target = $region45
    $region44: #{tpu_custom_call.1} parent=1 // pred_region
      %88 = dma.done [#allocation9], 512
    $region45: #{tpu_custom_call.1} parent=1 // pred_fallthru
      _
    %v89 = vld [vmem:[#allocation2] sm:$0xff]
    %v90 = vld [vmem:[#allocation8] sm:$0xff]
    %v91 = vld [vmem:[#allocation8 + $0x8] sm:$0xff]
    %v92 = vld [vmem:[#allocation8 + $0x10] sm:$0xff]
    %v93 = vld [vmem:[#allocation8 + $0x18] sm:$0xff]
    %v94 = vld [vmem:[#allocation5] sm:$0xff]
    %v95 = vld [vmem:[#allocation10] sm:$0xff]
    %v96 = vld [vmem:[#allocation10 + $0x8] sm:$0xff]
    %v97 = vld [vmem:[#allocation10 + $0x10] sm:$0xff]
    %v98 = vld [vmem:[#allocation10 + $0x18] sm:$0xff]
    %vm99 = vcmask 261120
    %v101 = vsel %vm99, %v94, 0
    %103 = vmatprep.subr.mxu0 0.0
    %104 = vmatpush1.msra.mxu0 0.0
    %105 = vmatprep.subr.mxu0 0.0
    %106 = vmatpush1.msra.mxu0 0.0
    %107 = vmatprep.subr.mxu0 0.0
    %108 = vmatpush1.msra.mxu0 0.0
    %109 = vmatprep.subr.mxu0 0.0
    %110 = vmatpush1.msra.mxu0 0.0
    %111 = vmatprep.subr.mxu0 0.0
    %112 = vmatpush1.msra.mxu0 0.0
    %113 = vmatprep.subr.mxu0 0.0
    %114 = vmatpush1.msra.mxu0 0.0
    %115 = vmatprep.subr.mxu0 0.0
    %116 = vmatpush1.msra.mxu0 0.0
    %117 = vmatprep.subr.mxu0 0.0
    %118 = vmatpush1.msra.mxu0 0.0
    %119 = vmatprep.subr.mxu0 0.0
    %120 = vmatpush1.msra.mxu0 0.0
    %121 = vmatprep.subr.mxu0 0.0
    %122 = vmatpush1.msra.mxu0 0.0
    %123 = vmatprep.subr.mxu0 0.0
    %124 = vmatpush1.msra.mxu0 0.0
    %125 = vmatprep.subr.mxu0 0.0
    %126 = vmatpush1.msra.mxu0 0.0
    %127 = vmatprep.subr.mxu0 0.0
    %128 = vmatpush1.msra.mxu0 %v98
    %129 = vmatprep.subr.mxu0 0.0
    %130 = vmatpush1.msra.mxu0 %v97
    %131 = vmatprep.subr.mxu0 0.0
    %132 = vmatpush1.msra.mxu0 %v96
    %133 = vmatprep.subr.mxu0 0.0
    %134 = vmatpush1.msra.mxu0 %v95
    %135 = vmatprep.subr.mxu0 0.0
    %136 = vmatpush2.msra.mxu0 0.0
    %137 = vmatprep.subr.mxu0 0.0
    %138 = vmatpush2.msra.mxu0 0.0
    %139 = vmatprep.subr.mxu0 0.0
    %140 = vmatpush2.msra.mxu0 0.0
    %141 = vmatprep.subr.mxu0 0.0
    %142 = vmatpush2.msra.mxu0 0.0
    %143 = vmatprep.subr.mxu0 0.0
    %144 = vmatpush2.msra.mxu0 0.0
    %145 = vmatprep.subr.mxu0 0.0
    %146 = vmatpush2.msra.mxu0 0.0
    %147 = vmatprep.subr.mxu0 0.0
    %148 = vmatpush2.msra.mxu0 0.0
    %149 = vmatprep.subr.mxu0 0.0
    %150 = vmatpush2.msra.mxu0 0.0
    %151 = vmatprep.subr.mxu0 0.0
    %152 = vmatpush2.msra.mxu0 0.0
    %153 = vmatprep.subr.mxu0 0.0
    %154 = vmatpush2.msra.mxu0 0.0
    %155 = vmatprep.subr.mxu0 0.0
    %156 = vmatpush2.msra.mxu0 0.0
    %157 = vmatprep.subr.mxu0 0.0
    %158 = vmatpush2.msra.mxu0 0.0
    %159 = vmatprep.subr.mxu0 0.0
    %160 = vmatpush2.msra.mxu0 0.0
    %161 = vmatprep.subr.mxu0 0.0
    %162 = vmatpush2.msra.mxu0 0.0
    %163 = vmatprep.subr.mxu0 0.0
    %164 = vmatpush2.msra.mxu0 0.0
    %165 = vmatprep.subr.mxu0 0.0
    %166 = vmatpush2.msra.mxu0 0.0
    %167 = vmatprep.mubr.f32.mxu0 0.0
    %168 = vmatmul.mubr.f32.gmra.mxu0 %v101
    %v169 = vpop.f32.mrf.mxu0
    %v170 = vadd.f32 0.0, %v169
    %v171 = vpop.f32.mrf.mxu0
    %172 = vdwg.mxu0
    %v174 = vsel %vm99, %v89, 0
    %176 = vmatprep.subr.mxu0 0.0
    %177 = vmatpush1.msra.mxu0 0.0
    %178 = vmatprep.subr.mxu0 0.0
    %179 = vmatpush1.msra.mxu0 0.0
    %180 = vmatprep.subr.mxu0 0.0
    %181 = vmatpush1.msra.mxu0 0.0
    %182 = vmatprep.subr.mxu0 0.0
    %183 = vmatpush1.msra.mxu0 0.0
    %184 = vmatprep.subr.mxu0 0.0
    %185 = vmatpush1.msra.mxu0 0.0
    %186 = vmatprep.subr.mxu0 0.0
    %187 = vmatpush1.msra.mxu0 0.0
    %188 = vmatprep.subr.mxu0 0.0
    %189 = vmatpush1.msra.mxu0 0.0
    %190 = vmatprep.subr.mxu0 0.0
    %191 = vmatpush1.msra.mxu0 0.0
    %192 = vmatprep.subr.mxu0 0.0
    %193 = vmatpush1.msra.mxu0 0.0
    %194 = vmatprep.subr.mxu0 0.0
    %195 = vmatpush1.msra.mxu0 0.0
    %196 = vmatprep.subr.mxu0 0.0
    %197 = vmatpush1.msra.mxu0 0.0
    %198 = vmatprep.subr.mxu0 0.0
    %199 = vmatpush1.msra.mxu0 0.0
    %200 = vmatprep.subr.mxu0 0.0
    %201 = vmatpush1.msra.mxu0 %v93
    %202 = vmatprep.subr.mxu0 0.0
    %203 = vmatpush1.msra.mxu0 %v92
    %204 = vmatprep.subr.mxu0 0.0
    %205 = vmatpush1.msra.mxu0 %v91
    %206 = vmatprep.subr.mxu0 0.0
    %207 = vmatpush1.msra.mxu0 %v90
    %208 = vmatprep.subr.mxu0 0.0
    %209 = vmatpush2.msra.mxu0 0.0
    %210 = vmatprep.subr.mxu0 0.0
    %211 = vmatpush2.msra.mxu0 0.0
    %212 = vmatprep.subr.mxu0 0.0
    %213 = vmatpush2.msra.mxu0 0.0
    %214 = vmatprep.subr.mxu0 0.0
    %215 = vmatpush2.msra.mxu0 0.0
    %216 = vmatprep.subr.mxu0 0.0
    %217 = vmatpush2.msra.mxu0 0.0
    %218 = vmatprep.subr.mxu0 0.0
    %219 = vmatpush2.msra.mxu0 0.0
    %220 = vmatprep.subr.mxu0 0.0
    %221 = vmatpush2.msra.mxu0 0.0
    %222 = vmatprep.subr.mxu0 0.0
    %223 = vmatpush2.msra.mxu0 0.0
    %224 = vmatprep.subr.mxu0 0.0
    %225 = vmatpush2.msra.mxu0 0.0
    %226 = vmatprep.subr.mxu0 0.0
    %227 = vmatpush2.msra.mxu0 0.0
    %228 = vmatprep.subr.mxu0 0.0
    %229 = vmatpush2.msra.mxu0 0.0
    %230 = vmatprep.subr.mxu0 0.0
    %231 = vmatpush2.msra.mxu0 0.0
    %232 = vmatprep.subr.mxu0 0.0
    %233 = vmatpush2.msra.mxu0 0.0
    %234 = vmatprep.subr.mxu0 0.0
    %235 = vmatpush2.msra.mxu0 0.0
    %236 = vmatprep.subr.mxu0 0.0
    %237 = vmatpush2.msra.mxu0 0.0
    %238 = vmatprep.subr.mxu0 0.0
    %239 = vmatpush2.msra.mxu0 0.0
    %240 = vmatprep.mubr.f32.mxu0 0.0
    %241 = vmatmul.mubr.f32.gmra.mxu0 %v174
    %v242 = vpop.f32.mrf.mxu0
    %v243 = vadd.f32 %v170, %v242
    %v244 = vpop.f32.mrf.mxu0
    %245 = vdwg.mxu0
    %v246 = vld [vmem:[%s5] sm:$0x1]
    %v248 = vlaneseq
    %v249 = vshrl.u32 %v248, 7
    %v250 = vsub.s32 0, %v249
    %v251 = vrot.slane %v246, %v250
    %v253 = vadd.f32 %v243, %v251
    %v254 = vld [vmem:[#allocation7] sm:$0xff]
    %v255 = vxor.u32 %v253, 2147483648
    %v256 = vmul.f32 %v255, 1.442695
    %v257 = vpow.pop %v256
    %v258 = vadd.f32 %v257, 1.0
    %v259 = vrcp.pop %v258
    %v260 = vmul.f32 1.0, %v259
    %v261 = vtanh.pop %v253
    %263 = vrot.lane.b32.xlu0 %v254, 32
    %v264 = vpop.permute.xlu0 %263
    %v266 = vmul.f32 %v260, %v264
    %268 = vrot.lane.b32.xlu0 %v261, 64
    %v269 = vpop.permute.xlu0 %268
    %v271 = vmul.f32 %v260, %v269
    %273 = vrot.lane.b32.xlu0 %v271, 32
    %v274 = vpop.permute.xlu0 %273
    %v276 = vadd.f32 %v266, %v274
    %v277 = vtanh.pop %v276
    %279 = vrot.lane.b32.xlu0 %v277, 64
    %v280 = vpop.permute.xlu0 %279
    %v282 = vmul.f32 %v260, %v280
    %284 = vrot.lane.b32.xlu0 %v282, 32
    %v285 = vpop.permute.xlu0 %284
    %287 = vst.msk [vmem:[#allocation11] sm:$0xff] %vm99, %v285
    %289 = vrot.lane.b32.xlu0 %v276, 96
    %v290 = vpop.permute.xlu0 %289
    %292 = vst.msk [vmem:[#allocation12] sm:$0xff] %vm99, %v290
    // Predicated region
    $region46: #{tpu_custom_call.1} parent=1 // pred_check
      _
    $region47: #{tpu_custom_call.1} parent=1 // pred_check_branch
      %294 = sbr.rel (0) target = $region49
    $region48: #{tpu_custom_call.1} parent=1 // pred_region
      %s296 = ssub.s32 128, 128
      %297 = vsyncadd [#allocation4], %s296
      %s299 = sshll.u32 [#allocation11], 4
      %s300 = int_to_ptr.vmem [resolvable:$true] %s299
      %302 = dma.vmem_to_hbm [thread:$0]  %s300, 128, %s6, [#allocation4]
    $region49: #{tpu_custom_call.1} parent=1 // pred_fallthru
      _
    // Predicated region
    $region50: #{tpu_custom_call.1} parent=1 // pred_check
      _
    $region51: #{tpu_custom_call.1} parent=1 // pred_check_branch
      %304 = sbr.rel (0) target = $region53
    $region52: #{tpu_custom_call.1} parent=1 // pred_region
      %s306 = ssub.s32 128, 128
      %307 = vsyncadd [#allocation13], %s306
      %s309 = sshll.u32 [#allocation12], 4
      %s310 = int_to_ptr.vmem [resolvable:$true] %s309
      %312 = dma.vmem_to_hbm [thread:$0]  %s310, 128, %s7, [#allocation13]
    $region53: #{tpu_custom_call.1} parent=1 // pred_fallthru
      _
    // Predicated region
    $region54: #{tpu_custom_call.1} parent=1 // pred_check
      _
    $region55: #{tpu_custom_call.1} parent=1 // pred_check_branch
      %314 = sbr.rel (0) target = $region57
    $region56: #{tpu_custom_call.1} parent=1 // pred_region
      %315 = dma.done [#allocation4], 128
    $region57: #{tpu_custom_call.1} parent=1 // pred_fallthru
      _
    // Predicated region
    $region58: #{tpu_custom_call.1} parent=1 // pred_check
      _
    $region59: #{tpu_custom_call.1} parent=1 // pred_check_branch
      %317 = sbr.rel (0) target = $region61
    $region60: #{tpu_custom_call.1} parent=1 // pred_region
      %318 = dma.done [#allocation13], 128
    $region61: #{tpu_custom_call.1} parent=1 // pred_fallthru
      _
    %319 = vsyncpa [#allocation3], 1
    %320 = vsyncpa [#allocation6], 1
    %321 = vsyncpa [#allocation9], 1
    %322 = vsyncpa [#allocation4], 1
    %323 = vsyncpa [#allocation13], 1

</llo_original>
